<compile_context>
chip_gen: v6e
topology: v6e:2x2x1
jax: 0.10.0
libtpu: 0.0.40
codegen_flags: <defaults>
</compile_context>

<pallas_src>
import functools

import jax
import jax.numpy as jnp
from jax.experimental import pallas as pl
from jax.experimental.pallas import tpu as pltpu

EPS = 1e-5                        # nn.BatchNorm1d default eps
_INV_SQRT2 = 0.7071067811865476   # 1/sqrt(2) for exact erf-GELU
LANE = 128
_MAX_TILE_H = 1024                # tile cap (amortizes per-step overhead without VMEM risk)


def _round_up(v, m):
    return (v + m - 1) // m * m


def _vmem_capacity_bytes():
    """Physical VMEM of the current TPU; falls back to the v7x 64 MiB per-core floor."""
    try:
        cap = getattr(pltpu.get_tpu_info(), "vmem_capacity_bytes", None)
        if cap:
            return int(cap)
    except Exception:
        pass
    return 64 << 20


def _working_set_bytes(B, Dp, TH, TD):
    """Conservative VMEM working-set estimate (assumes default double-buffering everywhere)."""
    return (2 * Dp * TH * 2       # w1 block, bf16
            + 2 * TH * TD * 2     # w2 block, bf16
            + 2 * 3 * TH * 4      # packed [b1; gamma; beta] block, f32
            + 2 * B * Dp * 2      # resident x (bf16)
            + 2 * B * TD * 4      # residual x block (f32)
            + 2 * TD * 4          # b2 block (f32)
            + 2 * B * TD * 4)     # output block (f32, resident accumulator)


def _pick_tile_h(Hp, Dp, TD, B, budget):
    """Largest TH (multiple of 128 that divides Hp, <= cap) whose working set fits `budget`."""
    best = LANE
    th = LANE
    top = min(Hp, _MAX_TILE_H)
    while th <= top:
        if Hp % th == 0 and _working_set_bytes(B, Dp, th, TD) <= budget:
            best = th
        th += LANE
    return best


def _two_layer_nn_kernel(xbf_ref, xres_ref, w1_ref, bng_ref, w2_ref, b2_ref, o_ref):
    h_idx = pl.program_id(1)

    # Output block's index_map is constant across the hidden (reduction) axis, so it stays
    # VMEM-resident: accumulate Linear2 partials directly into it (no scratch / finalize copy).
    @pl.when(h_idx == 0)
    def _init():
        o_ref[...] = xres_ref[...] + b2_ref[...]          # residual + bias2, f32

    # ---- Linear 1 block: [B, Dp] @ [Dp, TH] (bf16 MXU operands, f32 accumulation) ----
    h = jnp.dot(xbf_ref[...], w1_ref[...], preferred_element_type=jnp.float32)
    h = h + bng_ref[0:1, :]                               # + b1

    # ---- BatchNorm1d (training-mode biased batch stats), single pass, clamped variance ----
    inv_b = jnp.float32(1.0 / h.shape[0])
    mean = jnp.sum(h, axis=0, keepdims=True) * inv_b
    mean_sq = jnp.sum(h * h, axis=0, keepdims=True) * inv_b
    var = jnp.maximum(mean_sq - mean * mean, jnp.float32(0.0))
    hn = (h - mean) * jax.lax.rsqrt(var + jnp.float32(EPS))
    hn = hn * bng_ref[1:2, :] + bng_ref[2:3, :]           # * gamma + beta
    # TODO(synk): BatchNorm1d running_mean/running_var momentum updates (training side-state)
    # are not emitted; only the forward normalization is computed.

    # ---- GELU (exact erf, matches nn.GELU default) ----
    g = 0.5 * hn * (1.0 + jax.lax.erf(hn * jnp.float32(_INV_SQRT2)))

    # ---- Linear 2 partial product, accumulated into the resident output block ----
    o_ref[...] += jnp.dot(g.astype(jnp.bfloat16), w2_ref[...],
                          preferred_element_type=jnp.float32)


def _forward_padded(xbf, xres, w1p, bngp, w2p, b2p):
    B, Dp = xres.shape
    Hp = w1p.shape[1]

    # Dout split so v7x's second TensorCore can take half of w2 / half of the output.
    n_lanes = Dp // LANE
    if n_lanes >= 2 and n_lanes % 2 == 0:
        n_d, TD = 2, Dp // 2
    else:
        n_d, TD = 1, Dp

    phys = _vmem_capacity_bytes()
    budget = (phys * 3) // 4                    # working-set budget with compiler headroom
    TH = _pick_tile_h(Hp, Dp, TD, B, budget)
    n_h = Hp // TH

    grid_spec = pltpu.PrefetchScalarGridSpec(
        num_scalar_prefetch=0,
        grid=(n_d, n_h),                        # reduction (hidden) axis last
        in_specs=[
            pl.BlockSpec((B, Dp), lambda d, h: (0, 0)),    # x bf16 (resident MXU operand)
            pl.BlockSpec((B, TD), lambda d, h: (0, d)),    # x f32 residual, per-Dout block
            pl.BlockSpec((Dp, TH), lambda d, h: (0, h)),   # w1 column block
            pl.BlockSpec((3, TH), lambda d, h: (0, h)),    # packed [b1; gamma; beta]
            pl.BlockSpec((TH, TD), lambda d, h: (h, d)),   # w2 block
            pl.BlockSpec((1, TD), lambda d, h: (0, d)),    # b2
        ],
        out_specs=pl.BlockSpec((B, TD), lambda d, h: (0, d)),   # resident across h (accumulator)
    )

    cost = pl.CostEstimate(
        flops=2 * B * Hp * Dp * (n_d + 1),
        transcendentals=B * Hp * n_d,
        bytes_accessed=(xbf.size * 2 + xres.size * 4 + w1p.size * 2 + w2p.size * 2
                        + bngp.size * 4 + b2p.size * 4 + B * Dp * 4),
    )

    working = _working_set_bytes(B, Dp, TH, TD)
    vmem_limit = int(min(max(working + (4 << 20), 16 << 20), phys - (8 << 20)))

    return pl.pallas_call(
        _two_layer_nn_kernel,
        out_shape=jax.ShapeDtypeStruct((B, Dp), jnp.float32),
        grid_spec=grid_spec,
        compiler_params=pltpu.CompilerParams(
            dimension_semantics=("parallel", "arbitrary"),
            vmem_limit_bytes=vmem_limit,
        ),
        cost_estimate=cost,
    )(xbf, xres, w1p, bngp, w2p, b2p)


def prepare_params(w1, b1, gamma, beta, w2, b2):
    """Pad all feature dims to 128 lanes and cast weights to bf16 ONCE.

    Call once per weight set and reuse across forward calls (the per-call pad/cast was
    ~3-4x the kernel's own HBM traffic on this weight-streaming-bound kernel).
    w1: [Din, H] (pre-transposed so the kernel does x @ w1), w2: [H, Dout];
    b1/gamma/beta: [H] or [1, H]; b2: [Dout] or [1, Dout]. Requires Dout == Din (residual).
    """
    Din, H = w1.shape
    Dout = w2.shape[1]
    assert Dout == Din, "residual add requires out_features == in_features"

    f32, bf16 = jnp.float32, jnp.bfloat16
    Dp = _round_up(Din, LANE)
    Hp = _round_up(H, LANE)

    # Note: int8 (v5e/v6e) / fp8 (v7x) weight streaming with per-tile scales could halve the
    # weight bytes again; kept bf16 here to preserve accuracy headroom through BatchNorm.
    w1p = jnp.zeros((Dp, Hp), bf16).at[:Din, :H].set(w1.astype(bf16))
    w2p = jnp.zeros((Hp, Dp), bf16).at[:H, :Dout].set(w2.astype(bf16))
    bngp = jnp.zeros((3, Hp), f32)
    bngp = bngp.at[0, :H].set(jnp.reshape(b1, (-1,)).astype(f32))
    bngp = bngp.at[1, :H].set(jnp.reshape(gamma, (-1,)).astype(f32))
    bngp = bngp.at[2, :H].set(jnp.reshape(beta, (-1,)).astype(f32))
    b2p = jnp.zeros((1, Dp), f32).at[0, :Dout].set(jnp.reshape(b2, (-1,)).astype(f32))

    params = (w1p, bngp, w2p, b2p)
    params = jax.tree_util.tree_map(jnp.asarray, params)
    return params, Dout


@functools.partial(jax.jit, static_argnames=("dout",))
def two_layer_nn(x, params, *, dout):
    """Forward pass. `params` is the tuple from prepare_params; `dout` the true out_features."""
    w1p, bngp, w2p, b2p = params
    B, Din = x.shape
    Dp = w1p.shape[0]
    # Only the (small) activation is padded / cast per call; weights were prepared once.
    xres = jnp.zeros((B, Dp), jnp.float32).at[:, :Din].set(x.astype(jnp.float32))
    xbf = xres.astype(jnp.bfloat16)
    out = _forward_padded(xbf, xres, w1p, bngp, w2p, b2p)
    return out[:, :dout].astype(x.dtype)


def _reference(x, w1, b1, gamma, beta, w2, b2):
    h = x @ w1 + b1
    mean = jnp.mean(h, axis=0, keepdims=True)
    var = jnp.mean((h - mean) ** 2, axis=0, keepdims=True)
    hn = (h - mean) / jnp.sqrt(var + EPS) * gamma + beta
    g = 0.5 * hn * (1.0 + jax.lax.erf(hn / jnp.sqrt(2.0)))
    return g @ w2 + b2 + x


if __name__ == "__main__":
    # Small shapes consistent with the module: batch=8, in=out=32, hidden=64.
    B, Din, H = 8, 32, 64
    Dout = Din  # residual add requires out_features == in_features

    key = jax.random.PRNGKey(0)
    kx, k1, k2, k3, k4 = jax.random.split(key, 5)

    x = jax.random.normal(kx, (B, Din), dtype=jnp.float32)

    # Deterministic init mimicking PyTorch Linear defaults: U(-1/sqrt(fan_in), 1/sqrt(fan_in)).
    bnd1 = 1.0 / jnp.sqrt(jnp.float32(Din))
    w1 = jax.random.uniform(k1, (Din, H), jnp.float32, -bnd1, bnd1)   # pre-transposed
    b1 = jax.random.uniform(k2, (1, H), jnp.float32, -bnd1, bnd1)
    bnd2 = 1.0 / jnp.sqrt(jnp.float32(H))
    w2 = jax.random.uniform(k3, (H, Dout), jnp.float32, -bnd2, bnd2)  # pre-transposed
    b2 = jax.random.uniform(k4, (1, Dout), jnp.float32, -bnd2, bnd2)
    # BatchNorm1d default affine params.
    gamma = jnp.ones((1, H), jnp.float32)
    beta = jnp.zeros((1, H), jnp.float32)

    # Pad / cast the weights ONCE (cache `params` across calls).
    params, dout = prepare_params(w1, b1, gamma, beta, w2, b2)
    params = jax.block_until_ready(params)

    out = two_layer_nn(x, params, dout=dout)
    out = jax.block_until_ready(out)

    ref = _reference(x, w1, b1, gamma, beta, w2, b2)
    # Tolerance loosened vs pure-f32 because the MXU operands are bf16 (f32 accumulation).
    assert out.shape == ref.shape, "shape mismatch vs reference"
    assert jnp.allclose(out, ref, atol=5e-2, rtol=5e-2), "mismatch vs reference"

    print("KERNEL_OK")
</pallas_src>

<mosaic_0001>
module attributes {stable_mosaic.version = 11 : i64} {
  func.func @_two_layer_nn_kernel(%arg0: i32, %arg1: i32, %arg2: memref<8x128xbf16, #tpu.memory_space<vmem>>, %arg3: memref<8x128xf32, #tpu.memory_space<vmem>>, %arg4: memref<128x128xbf16, #tpu.memory_space<vmem>>, %arg5: memref<3x128xf32, #tpu.memory_space<vmem>>, %arg6: memref<128x128xbf16, #tpu.memory_space<vmem>>, %arg7: memref<1x128xf32, #tpu.memory_space<vmem>>, %arg8: memref<8x128xf32, #tpu.memory_space<vmem>>) attributes {dimension_semantics = [#tpu.dimension_semantics<parallel>, #tpu.dimension_semantics<arbitrary>], iteration_bounds = array<i64: 1, 1>, scalar_prefetch = 0 : i64, scratch_operands = 0 : i64, tpu.core_type = #tpu.core_type<tc>, window_params = [{pipeline_mode = #tpu.pipeline_mode<synchronous>, transform_indices = @transform_0, window_bounds = array<i64: 8, 128>}, {transform_indices = @transform_1, window_bounds = array<i64: 8, 128>}, {transform_indices = @transform_2, window_bounds = array<i64: 128, 128>}, {transform_indices = @transform_3, window_bounds = array<i64: 3, 128>}, {transform_indices = @transform_4, window_bounds = array<i64: 128, 128>}, {transform_indices = @transform_5, window_bounds = array<i64: 1, 128>}, {transform_indices = @transform_6, window_bounds = array<i64: 8, 128>}]} {
    %c0_i32 = arith.constant 0 : i32
    %0 = arith.cmpi eq, %arg1, %c0_i32 : i32
    %1 = arith.extui %0 : i1 to i32
    %c0_i32_0 = arith.constant 0 : i32
    %2 = arith.cmpi ne, %1, %c0_i32_0 : i32
    scf.if %2 {
      %c0_24 = arith.constant 0 : index
      %c0_25 = arith.constant 0 : index
      %49 = vector.load %arg3[%c0_24, %c0_25] : memref<8x128xf32, #tpu.memory_space<vmem>>, vector<8x128xf32>
      %c0_26 = arith.constant 0 : index
      %c0_27 = arith.constant 0 : index
      %50 = vector.load %arg7[%c0_26, %c0_27] : memref<1x128xf32, #tpu.memory_space<vmem>>, vector<1x128xf32>
      %51 = vector.broadcast %50 : vector<1x128xf32> to vector<8x128xf32>
      %52 = arith.addf %49, %51 : vector<8x128xf32>
      %c0_28 = arith.constant 0 : index
      %c0_29 = arith.constant 0 : index
      %53 = vector.load %arg8[%c0_28, %c0_29] : memref<8x128xf32, #tpu.memory_space<vmem>>, vector<8x128xf32>
      tpu.vector_store %arg8[%c0_28, %c0_29], %52 {strides = array<i32>} : memref<8x128xf32, #tpu.memory_space<vmem>>, vector<8x128xf32>,
    } else {
    }
    %c0 = arith.constant 0 : index
    %c0_1 = arith.constant 0 : index
    %3 = vector.load %arg2[%c0, %c0_1] : memref<8x128xbf16, #tpu.memory_space<vmem>>, vector<8x128xbf16>
    %c0_2 = arith.constant 0 : index
    %c0_3 = arith.constant 0 : index
    %4 = vector.load %arg4[%c0_2, %c0_3] : memref<128x128xbf16, #tpu.memory_space<vmem>>, vector<128x128xbf16>
    %cst = arith.constant dense<0.000000e+00> : vector<8x128xf32>
    %5 = tpu.matmul %3, %4, %cst {dimension_numbers = #tpu.dot_dimension_numbers<[1], [0], [0], [1], [0, 0, 1, 1], [], []>} : vector<8x128xbf16>, vector<128x128xbf16>, vector<8x128xf32> -> vector<8x128xf32>
    %c0_4 = arith.constant 0 : index
    %c0_5 = arith.constant 0 : index
    %6 = vector.load %arg5[%c0_4, %c0_5] : memref<3x128xf32, #tpu.memory_space<vmem>>, vector<1x128xf32>
    %7 = vector.broadcast %6 : vector<1x128xf32> to vector<8x128xf32>
    %8 = arith.addf %5, %7 : vector<8x128xf32>
    %cst_6 = arith.constant dense<0.000000e+00> : vector<128xf32>
    %9 = vector.multi_reduction <add>, %8, %cst_6 [0] : vector<8x128xf32> to vector<128xf32>
    %10 = vector.shape_cast %9 : vector<128xf32> to vector<1x128xf32>
    %cst_7 = arith.constant 1.250000e-01 : f32
    %11 = vector.broadcast %cst_7 : f32 to vector<1x128xf32>
    %12 = arith.mulf %10, %11 : vector<1x128xf32>
    %13 = arith.mulf %8, %8 : vector<8x128xf32>
    %cst_8 = arith.constant dense<0.000000e+00> : vector<128xf32>
    %14 = vector.multi_reduction <add>, %13, %cst_8 [0] : vector<8x128xf32> to vector<128xf32>
    %15 = vector.shape_cast %14 : vector<128xf32> to vector<1x128xf32>
    %cst_9 = arith.constant 1.250000e-01 : f32
    %16 = vector.broadcast %cst_9 : f32 to vector<1x128xf32>
    %17 = arith.mulf %15, %16 : vector<1x128xf32>
    %18 = arith.mulf %12, %12 : vector<1x128xf32>
    %19 = arith.subf %17, %18 : vector<1x128xf32>
    %cst_10 = arith.constant 0.000000e+00 : f32
    %20 = vector.broadcast %cst_10 : f32 to vector<1x128xf32>
    %21 = arith.maximumf %19, %20 : vector<1x128xf32>
    %22 = vector.broadcast %12 : vector<1x128xf32> to vector<8x128xf32>
    %23 = arith.subf %8, %22 : vector<8x128xf32>
    %cst_11 = arith.constant 9.99999974E-6 : f32
    %24 = vector.broadcast %cst_11 : f32 to vector<1x128xf32>
    %25 = arith.addf %21, %24 : vector<1x128xf32>
    %26 = math.rsqrt %25 : vector<1x128xf32>
    %27 = vector.broadcast %26 : vector<1x128xf32> to vector<8x128xf32>
    %28 = arith.mulf %23, %27 : vector<8x128xf32>
    %c1 = arith.constant 1 : index
    %c0_12 = arith.constant 0 : index
    %29 = vector.load %arg5[%c1, %c0_12] : memref<3x128xf32, #tpu.memory_space<vmem>>, vector<1x128xf32>
    %30 = vector.broadcast %29 : vector<1x128xf32> to vector<8x128xf32>
    %31 = arith.mulf %28, %30 : vector<8x128xf32>
    %c2 = arith.constant 2 : index
    %c0_13 = arith.constant 0 : index
    %32 = vector.load %arg5[%c2, %c0_13] : memref<3x128xf32, #tpu.memory_space<vmem>>, vector<1x128xf32>
    %33 = vector.broadcast %32 : vector<1x128xf32> to vector<8x128xf32>
    %34 = arith.addf %31, %33 : vector<8x128xf32>
    %cst_14 = arith.constant 5.000000e-01 : f32
    %35 = vector.broadcast %cst_14 : f32 to vector<8x128xf32>
    %36 = arith.mulf %35, %34 : vector<8x128xf32>
    %cst_15 = arith.constant 0.707106769 : f32
    %37 = vector.broadcast %cst_15 : f32 to vector<8x128xf32>
    %38 = arith.mulf %34, %37 : vector<8x128xf32>
    %39 = math.erf %38 : vector<8x128xf32>
    %cst_16 = arith.constant 1.000000e+00 : f32
    %40 = vector.broadcast %cst_16 : f32 to vector<8x128xf32>
    %41 = arith.addf %40, %39 : vector<8x128xf32>
    %42 = arith.mulf %36, %41 : vector<8x128xf32>
    %c0_17 = arith.constant 0 : index
    %c0_18 = arith.constant 0 : index
    %43 = vector.load %arg8[%c0_17, %c0_18] : memref<8x128xf32, #tpu.memory_space<vmem>>, vector<8x128xf32>
    %44 = arith.truncf %42 : vector<8x128xf32> to vector<8x128xbf16>
    %c0_19 = arith.constant 0 : index
    %c0_20 = arith.constant 0 : index
    %45 = vector.load %arg6[%c0_19, %c0_20] : memref<128x128xbf16, #tpu.memory_space<vmem>>, vector<128x128xbf16>
    %cst_21 = arith.constant dense<0.000000e+00> : vector<8x128xf32>
    %46 = tpu.matmul %44, %45, %cst_21 {dimension_numbers = #tpu.dot_dimension_numbers<[1], [0], [0], [1], [0, 0, 1, 1], [], []>} : vector<8x128xbf16>, vector<128x128xbf16>, vector<8x128xf32> -> vector<8x128xf32>
    %47 = arith.addf %43, %46 : vector<8x128xf32>
    %c0_22 = arith.constant 0 : index
    %c0_23 = arith.constant 0 : index
    %48 = vector.load %arg8[%c0_22, %c0_23] : memref<8x128xf32, #tpu.memory_space<vmem>>, vector<8x128xf32>
    tpu.vector_store %arg8[%c0_22, %c0_23], %47 {strides = array<i32>} : memref<8x128xf32, #tpu.memory_space<vmem>>, vector<8x128xf32>,
    return
  }
  func.func @transform_0(%arg0: i32, %arg1: i32) -> (i32, i32) {
    %c0_i32 = arith.constant 0 : i32
    %c0_i32_0 = arith.constant 0 : i32
    %c0_i32_1 = arith.constant 0 : i32
    return %c0_i32, %c0_i32_0 : i32, i32
  }
  func.func @transform_1(%arg0: i32, %arg1: i32) -> (i32, i32) {
    %c0_i32 = arith.constant 0 : i32
    %c0_i32_0 = arith.constant 0 : i32
    return %c0_i32, %arg0 : i32, i32
  }
  func.func @transform_2(%arg0: i32, %arg1: i32) -> (i32, i32) {
    %c0_i32 = arith.constant 0 : i32
    %c0_i32_0 = arith.constant 0 : i32
    return %c0_i32, %arg1 : i32, i32
  }
  func.func @transform_3(%arg0: i32, %arg1: i32) -> (i32, i32) {
    %c0_i32 = arith.constant 0 : i32
    %c0_i32_0 = arith.constant 0 : i32
    return %c0_i32, %arg1 : i32, i32
  }
  func.func @transform_4(%arg0: i32, %arg1: i32) -> (i32, i32) {
    %c0_i32 = arith.constant 0 : i32
    return %arg1, %arg0 : i32, i32
  }
  func.func @transform_5(%arg0: i32, %arg1: i32) -> (i32, i32) {
    %c0_i32 = arith.constant 0 : i32
    %c0_i32_0 = arith.constant 0 : i32
    return %c0_i32, %arg0 : i32, i32
  }
  func.func @transform_6(%arg0: i32, %arg1: i32) -> (i32, i32) {
    %c0_i32 = arith.constant 0 : i32
    %c0_i32_0 = arith.constant 0 : i32
    return %c0_i32, %arg0 : i32, i32
  }
}

</mosaic_0001>

<llo_original>
// kernel: two_layer_nn.1
$region0: #{two_layer_nn.1}
  #allocation0 [shape = 'u32[]', space=smem, size = 0x4, offset = 0x4, fixed_abs, tag = 'smem constant byte address 0x4 - core index']
  #allocation1 [shape = 'u32[144,128]{1,0:T(1,128)}', space=vmem, size = 0x12000, scoped, tag = 'internal scratch']
  %s0 = inlined_call_operand.vmem [shape: bf16[8,128], index: 0, kind: input, shape index: {}]
  %s1 = inlined_call_operand.vmem [shape: f32[8,128], index: 1, kind: input, shape index: {}]
  %s2 = inlined_call_operand.hbm [shape: bf16[128,128], index: 2, kind: input, shape index: {}]
  %s3 = inlined_call_operand.vmem [shape: f32[3,128], index: 3, kind: input, shape index: {}]
  %s4 = inlined_call_operand.hbm [shape: bf16[128,128], index: 4, kind: input, shape index: {}]
  %s5 = inlined_call_operand.vmem [shape: f32[1,128], index: 5, kind: input, shape index: {}]
  %s6 = inlined_call_operand.hbm [shape: f32[8,128], index: 6, kind: output, shape index: {}]
  %s7 = sld [smem:[#allocation0]]
  $region46: #{two_layer_nn.1} parent=0
    _
  %s9 = ssub.s32 1, %s7
  %s10 = scalar_select 0, %s9, %s7
  $region1: #{two_layer_nn.1} parent=0
    #allocation2 [shape = 'u8[32768]{0}', space=vmem, size = 0x8000, scoped, tag = 'input window, operand 2, single buffered']
    #allocation3 [shape = 's32[1]{0}', space=sflag, size = 0x4, scoped, tag = 'scoped memory for two_layer_nn.1']
    #allocation4 [shape = 's32[1]{0}', space=sflag, size = 0x4, scoped, tag = 'scoped memory for two_layer_nn.1']
    #allocation5 [shape = 'u8[32768]{0}', space=vmem, size = 0x8000, scoped, tag = 'input window, operand 4, single buffered']
    #allocation6 [shape = 's32[1]{0}', space=sflag, size = 0x4, scoped, tag = 'scoped memory for two_layer_nn.1']
    #allocation7 [shape = 'u8[4096]{0}', space=vmem, size = 0x1000, scoped, tag = 'output window, operand 0, single buffered']
    %11 = vsyncpa [#allocation3], 0
    %12 = vsyncpa [#allocation6], 0
    %13 = vsyncpa [#allocation4], 0
    // Predicated region
    $region2: #{two_layer_nn.1} parent=1 // pred_check
      _
    $region3: #{two_layer_nn.1} parent=1 // pred_check_branch
      %15 = sbr.rel (0) target = $region5
    $region4: #{two_layer_nn.1} parent=1 // pred_region
      _
    $region5: #{two_layer_nn.1} parent=1 // pred_fallthru
      _
    // Predicated region
    $region6: #{two_layer_nn.1} parent=1 // pred_check
      _
    $region7: #{two_layer_nn.1} parent=1 // pred_check_branch
      %17 = sbr.rel (0) target = $region9
    $region8: #{two_layer_nn.1} parent=1 // pred_region
      _
    $region9: #{two_layer_nn.1} parent=1 // pred_fallthru
      _
    // Predicated region
    $region10: #{two_layer_nn.1} parent=1 // pred_check
      _
    $region11: #{two_layer_nn.1} parent=1 // pred_check_branch
      %19 = sbr.rel (0) target = $region13
    $region12: #{two_layer_nn.1} parent=1 // pred_region
      %s21 = ssub.s32 1024, 1024
      %22 = vsyncadd [#allocation3], %s21
      %s23 = sshll.u32 [#allocation2], 4
      %s24 = int_to_ptr.vmem [resolvable:$true] %s23
      %29 = dma.hbm_to_vmem [thread:$0]  %s2, 1024, %s24, [#allocation3], 64, 64, 4
    $region13: #{two_layer_nn.1} parent=1 // pred_fallthru
      _
    // Predicated region
    $region14: #{two_layer_nn.1} parent=1 // pred_check
      _
    $region15: #{two_layer_nn.1} parent=1 // pred_check_branch
      %31 = sbr.rel (0) target = $region17
    $region16: #{two_layer_nn.1} parent=1 // pred_region
      _
    $region17: #{two_layer_nn.1} parent=1 // pred_fallthru
      _
    // Predicated region
    $region18: #{two_layer_nn.1} parent=1 // pred_check
      _
    $region19: #{two_layer_nn.1} parent=1 // pred_check_branch
      %33 = sbr.rel (0) target = $region21
    $region20: #{two_layer_nn.1} parent=1 // pred_region
      %s35 = ssub.s32 1024, 1024
      %36 = vsyncadd [#allocation6], %s35
      %s37 = sshll.u32 [#allocation5], 4
      %s38 = int_to_ptr.vmem [resolvable:$true] %s37
      %43 = dma.hbm_to_vmem [thread:$0]  %s4, 1024, %s38, [#allocation6], 64, 64, 4
    $region21: #{two_layer_nn.1} parent=1 // pred_fallthru
      _
    // Predicated region
    $region22: #{two_layer_nn.1} parent=1 // pred_check
      _
    $region23: #{two_layer_nn.1} parent=1 // pred_check_branch
      %45 = sbr.rel (0) target = $region25
    $region24: #{two_layer_nn.1} parent=1 // pred_region
      _
    $region25: #{two_layer_nn.1} parent=1 // pred_fallthru
      _
    // Predicated region
    $region26: #{two_layer_nn.1} parent=1 // pred_check
      _
    $region27: #{two_layer_nn.1} parent=1 // pred_check_branch
      %47 = sbr.rel (0) target = $region29
    $region28: #{two_layer_nn.1} parent=1 // pred_region
      %48 = dma.done [#allocation3], 1024
    $region29: #{two_layer_nn.1} parent=1 // pred_fallthru
      _
    // Predicated region
    $region30: #{two_layer_nn.1} parent=1 // pred_check
      _
    $region31: #{two_layer_nn.1} parent=1 // pred_check_branch
      %50 = sbr.rel (0) target = $region33
    $region32: #{two_layer_nn.1} parent=1 // pred_region
      %51 = dma.done [#allocation6], 1024
    $region33: #{two_layer_nn.1} parent=1 // pred_fallthru
      _
    %p53 = scmp.eq.s32.totalorder 0, 0
    // Predicated region
    $region34: #{two_layer_nn.1} parent=1 // pred_check
      %p54 = pneg %p53
    $region35: #{two_layer_nn.1} parent=1 // pred_check_branch
      %56 = sbr.rel (%p54) target = $region37
    $region36: #{two_layer_nn.1} parent=1 // pred_region
      %v57 = vld [vmem:[%s1] sm:$0xff]
      %v58 = vld [vmem:[%s5] sm:$0x1]
      %v60 = vlaneseq
      %v61 = vshrl.u32 %v60, 7
      %v62 = vsub.s32 0, %v61
      %v63 = vrot.slane %v58, %v62
      %v65 = vadd.f32 %v57, %v63
      %66 = vst [vmem:[#allocation7] sm:$0xff] %v65
    $region37: #{two_layer_nn.1} parent=1 // pred_fallthru
      _
    %v67 = vld [vmem:[%s0] sm:$0xf]
    %v68 = vld [vmem:[#allocation2] sm:$0xf]
    %v69 = vld [vmem:[#allocation2 + $0x4] sm:$0xf]
    %v70 = vld [vmem:[#allocation2 + $0x8] sm:$0xf]
    %v71 = vld [vmem:[#allocation2 + $0xc] sm:$0xf]
    %v72 = vld [vmem:[#allocation2 + $0x10] sm:$0xf]
    %v73 = vld [vmem:[#allocation2 + $0x14] sm:$0xf]
    %v74 = vld [vmem:[#allocation2 + $0x18] sm:$0xf]
    %v75 = vld [vmem:[#allocation2 + $0x1c] sm:$0xf]
    %v76 = vld [vmem:[#allocation2 + $0x20] sm:$0xf]
    %v77 = vld [vmem:[#allocation2 + $0x24] sm:$0xf]
    %v78 = vld [vmem:[#allocation2 + $0x28] sm:$0xf]
    %v79 = vld [vmem:[#allocation2 + $0x2c] sm:$0xf]
    %v80 = vld [vmem:[#allocation2 + $0x30] sm:$0xf]
    %v81 = vld [vmem:[#allocation2 + $0x34] sm:$0xf]
    %v82 = vld [vmem:[#allocation2 + $0x38] sm:$0xf]
    %v83 = vld [vmem:[#allocation2 + $0x3c] sm:$0xf]
    %v84 = vld [vmem:[%s3] sm:$0x1]
    %v85 = vlaneseq
    %v86 = vshrl.u32 %v85, 7
    %v87 = vsub.s32 0, %v86
    %v88 = vrot.slane %v84, %v87
    %v105 = vunpack.c.l.b16 %v68
    %v106 = vunpack.c.l.b16 %v69
    %v107 = vunpack.c.l.b16 %v70
    %v108 = vunpack.c.l.b16 %v71
    %v109 = vunpack.c.l.b16 %v72
    %v110 = vunpack.c.l.b16 %v73
    %v111 = vunpack.c.l.b16 %v74
    %v112 = vunpack.c.l.b16 %v75
    %v113 = vunpack.c.l.b16 %v76
    %v114 = vunpack.c.l.b16 %v77
    %v115 = vunpack.c.l.b16 %v78
    %v116 = vunpack.c.l.b16 %v79
    %v117 = vunpack.c.l.b16 %v80
    %v118 = vunpack.c.l.b16 %v81
    %v119 = vunpack.c.l.b16 %v82
    %v120 = vunpack.c.l.b16 %v83
    %v121 = vpack.c.b16 %v106, %v105
    %v122 = vpack.c.b16 %v108, %v107
    %v123 = vpack.c.b16 %v110, %v109
    %v124 = vpack.c.b16 %v112, %v111
    %v125 = vpack.c.b16 %v114, %v113
    %v126 = vpack.c.b16 %v116, %v115
    %v127 = vpack.c.b16 %v118, %v117
    %v128 = vpack.c.b16 %v120, %v119
    %137 = vmatprep.subr.bf16.mxu0 0
    %138 = vmatpush1.bf16.msra.mxu0 %v128
    %139 = vmatprep.subr.bf16.mxu0 0
    %140 = vmatpush1.bf16.msra.mxu0 %v127
    %141 = vmatprep.subr.bf16.mxu0 0
    %142 = vmatpush1.bf16.msra.mxu0 %v126
    %143 = vmatprep.subr.bf16.mxu0 0
    %144 = vmatpush1.bf16.msra.mxu0 %v125
    %145 = vmatprep.subr.bf16.mxu0 0
    %146 = vmatpush1.bf16.msra.mxu0 %v124
    %147 = vmatprep.subr.bf16.mxu0 0
    %148 = vmatpush1.bf16.msra.mxu0 %v123
    %149 = vmatprep.subr.bf16.mxu0 0
    %150 = vmatpush1.bf16.msra.mxu0 %v122
    %151 = vmatprep.subr.bf16.mxu0 0
    %152 = vmatpush1.bf16.msra.mxu0 %v121
    %153 = vmatprep.subr.bf16.mxu0 0
    %154 = vmatpush2.bf16.msra.mxu0 0
    %155 = vmatprep.subr.bf16.mxu0 0
    %156 = vmatpush2.bf16.msra.mxu0 0
    %157 = vmatprep.subr.bf16.mxu0 0
    %158 = vmatpush2.bf16.msra.mxu0 0
    %159 = vmatprep.subr.bf16.mxu0 0
    %160 = vmatpush2.bf16.msra.mxu0 0
    %161 = vmatprep.subr.bf16.mxu0 0
    %162 = vmatpush2.bf16.msra.mxu0 0
    %163 = vmatprep.subr.bf16.mxu0 0
    %164 = vmatpush2.bf16.msra.mxu0 0
    %165 = vmatprep.subr.bf16.mxu0 0
    %166 = vmatpush2.bf16.msra.mxu0 0
    %167 = vmatprep.subr.bf16.mxu0 0
    %168 = vmatpush2.bf16.msra.mxu0 0
    %169 = vmatprep.mubr.bf16.mxu0 0
    %170 = vmatmul.mubr.bf16.gmra.mxu0 %v67
    %v171 = vpop.f32.mrf.mxu0
    %v172 = vadd.f32 %v88, %v171
    %v173 = vpop.f32.mrf.mxu0
    %v174 = vpop.f32.mrf.mxu0
    %v175 = vpop.f32.mrf.mxu0
    %176 = vdwg.mxu0
    %v177 = vrot.slane %v172, 4
    %v178 = vadd.f32 %v172, %v177
    %v179 = vrot.slane %v178, 2
    %v180 = vadd.f32 %v178, %v179
    %v181 = vrot.slane %v180, 1
    %v182 = vadd.f32 %v180, %v181
    %v183 = vmul.f32 %v182, 0.125
    %v184 = vmul.f32 %v172, %v172
    %v185 = vrot.slane %v184, 4
    %v186 = vadd.f32 %v184, %v185
    %v187 = vrot.slane %v186, 2
    %v188 = vadd.f32 %v186, %v187
    %v189 = vrot.slane %v188, 1
    %v190 = vadd.f32 %v188, %v189
    %v191 = vmul.f32 %v190, 0.125
    %v192 = vmul.f32 %v183, %v183
    %v193 = vsub.f32 %v191, %v192
    %v194 = vmax.f32 %v193, 0.0
    %v195 = vsub.f32 %v172, %v183
    %v196 = vadd.f32 %v194, 1e-05
    %v197 = vrsqrt.pop %v196
    %v198 = vmul.f32 %v195, %v197
    %v199 = vld [vmem:[%s3 + $0x1] sm:$0x1]
    %v200 = vlaneseq
    %v201 = vshrl.u32 %v200, 7
    %v202 = vsub.s32 0, %v201
    %v203 = vrot.slane %v199, %v202
    %v204 = vmul.f32 %v198, %v203
    %v205 = vld [vmem:[%s3 + $0x2] sm:$0x1]
    %v206 = vlaneseq
    %v207 = vshrl.u32 %v206, 7
    %v208 = vsub.s32 0, %v207
    %v209 = vrot.slane %v205, %v208
    %v210 = vadd.f32 %v204, %v209
    %v211 = vmul.f32 %v210, 0.5
    %v212 = vmul.f32 %v210, 0.70710677
    %v213 = verf.f32.pop %v212
    %v214 = vadd.f32 %v213, 1.0
    %v215 = vmul.f32 %v211, %v214
    %v216 = vld [vmem:[#allocation7] sm:$0xff]
    %v217 = vpack.c.bf16 %v215, %v215
    %v218 = vld [vmem:[#allocation5] sm:$0xf]
    %v219 = vld [vmem:[#allocation5 + $0x4] sm:$0xf]
    %v220 = vld [vmem:[#allocation5 + $0x8] sm:$0xf]
    %v221 = vld [vmem:[#allocation5 + $0xc] sm:$0xf]
    %v222 = vld [vmem:[#allocation5 + $0x10] sm:$0xf]
    %v223 = vld [vmem:[#allocation5 + $0x14] sm:$0xf]
    %v224 = vld [vmem:[#allocation5 + $0x18] sm:$0xf]
    %v225 = vld [vmem:[#allocation5 + $0x1c] sm:$0xf]
    %v226 = vld [vmem:[#allocation5 + $0x20] sm:$0xf]
    %v227 = vld [vmem:[#allocation5 + $0x24] sm:$0xf]
    %v228 = vld [vmem:[#allocation5 + $0x28] sm:$0xf]
    %v229 = vld [vmem:[#allocation5 + $0x2c] sm:$0xf]
    %v230 = vld [vmem:[#allocation5 + $0x30] sm:$0xf]
    %v231 = vld [vmem:[#allocation5 + $0x34] sm:$0xf]
    %v232 = vld [vmem:[#allocation5 + $0x38] sm:$0xf]
    %v233 = vld [vmem:[#allocation5 + $0x3c] sm:$0xf]
    %v250 = vunpack.c.l.b16 %v218
    %v251 = vunpack.c.l.b16 %v219
    %v252 = vunpack.c.l.b16 %v220
    %v253 = vunpack.c.l.b16 %v221
    %v254 = vunpack.c.l.b16 %v222
    %v255 = vunpack.c.l.b16 %v223
    %v256 = vunpack.c.l.b16 %v224
    %v257 = vunpack.c.l.b16 %v225
    %v258 = vunpack.c.l.b16 %v226
    %v259 = vunpack.c.l.b16 %v227
    %v260 = vunpack.c.l.b16 %v228
    %v261 = vunpack.c.l.b16 %v229
    %v262 = vunpack.c.l.b16 %v230
    %v263 = vunpack.c.l.b16 %v231
    %v264 = vunpack.c.l.b16 %v232
    %v265 = vunpack.c.l.b16 %v233
    %v266 = vpack.c.b16 %v251, %v250
    %v267 = vpack.c.b16 %v253, %v252
    %v268 = vpack.c.b16 %v255, %v254
    %v269 = vpack.c.b16 %v257, %v256
    %v270 = vpack.c.b16 %v259, %v258
    %v271 = vpack.c.b16 %v261, %v260
    %v272 = vpack.c.b16 %v263, %v262
    %v273 = vpack.c.b16 %v265, %v264
    %282 = vmatprep.subr.bf16.mxu0 0
    %283 = vmatpush1.bf16.msra.mxu0 %v273
    %284 = vmatprep.subr.bf16.mxu0 0
    %285 = vmatpush1.bf16.msra.mxu0 %v272
    %286 = vmatprep.subr.bf16.mxu0 0
    %287 = vmatpush1.bf16.msra.mxu0 %v271
    %288 = vmatprep.subr.bf16.mxu0 0
    %289 = vmatpush1.bf16.msra.mxu0 %v270
    %290 = vmatprep.subr.bf16.mxu0 0
    %291 = vmatpush1.bf16.msra.mxu0 %v269
    %292 = vmatprep.subr.bf16.mxu0 0
    %293 = vmatpush1.bf16.msra.mxu0 %v268
    %294 = vmatprep.subr.bf16.mxu0 0
    %295 = vmatpush1.bf16.msra.mxu0 %v267
    %296 = vmatprep.subr.bf16.mxu0 0
    %297 = vmatpush1.bf16.msra.mxu0 %v266
    %298 = vmatprep.subr.bf16.mxu0 0
    %299 = vmatpush2.bf16.msra.mxu0 0
    %300 = vmatprep.subr.bf16.mxu0 0
    %301 = vmatpush2.bf16.msra.mxu0 0
    %302 = vmatprep.subr.bf16.mxu0 0
    %303 = vmatpush2.bf16.msra.mxu0 0
    %304 = vmatprep.subr.bf16.mxu0 0
    %305 = vmatpush2.bf16.msra.mxu0 0
    %306 = vmatprep.subr.bf16.mxu0 0
    %307 = vmatpush2.bf16.msra.mxu0 0
    %308 = vmatprep.subr.bf16.mxu0 0
    %309 = vmatpush2.bf16.msra.mxu0 0
    %310 = vmatprep.subr.bf16.mxu0 0
    %311 = vmatpush2.bf16.msra.mxu0 0
    %312 = vmatprep.subr.bf16.mxu0 0
    %313 = vmatpush2.bf16.msra.mxu0 0
    %314 = vmatprep.mubr.bf16.mxu0 0
    %315 = vmatmul.mubr.bf16.gmra.mxu0 %v217
    %v316 = vpop.f32.mrf.mxu0
    %v317 = vadd.f32 0.0, %v316
    %v318 = vpop.f32.mrf.mxu0
    %v319 = vpop.f32.mrf.mxu0
    %v320 = vpop.f32.mrf.mxu0
    %321 = vdwg.mxu0
    %v322 = vadd.f32 %v216, %v317
    %323 = vst [vmem:[#allocation7] sm:$0xff] %v322
    // Predicated region
    $region38: #{two_layer_nn.1} parent=1 // pred_check
      _
    $region39: #{two_layer_nn.1} parent=1 // pred_check_branch
      %325 = sbr.rel (0) target = $region41
    $region40: #{two_layer_nn.1} parent=1 // pred_region
      %s327 = ssub.s32 128, 128
      %328 = vsyncadd [#allocation4], %s327
      %s330 = sshll.u32 [#allocation7], 4
      %s331 = int_to_ptr.vmem [resolvable:$true] %s330
      %333 = dma.vmem_to_hbm [thread:$0]  %s331, 128, %s6, [#allocation4]
    $region41: #{two_layer_nn.1} parent=1 // pred_fallthru
      _
    // Predicated region
    $region42: #{two_layer_nn.1} parent=1 // pred_check
      _
    $region43: #{two_layer_nn.1} parent=1 // pred_check_branch
      %335 = sbr.rel (0) target = $region45
    $region44: #{two_layer_nn.1} parent=1 // pred_region
      %336 = dma.done [#allocation4], 128
    $region45: #{two_layer_nn.1} parent=1 // pred_fallthru
      _
    %337 = vsyncpa [#allocation3], 1
    %338 = vsyncpa [#allocation6], 1
    %339 = vsyncpa [#allocation4], 1

</llo_original>
